<compile_context>
chip_gen: v7x
topology: tpu7x:2x2x1
jax: 0.10.0
libtpu: 0.0.40
codegen_flags: <defaults>
</compile_context>

<pallas_src>
import functools

import jax
import jax.numpy as jnp
from jax import lax
from jax.experimental import pallas as pl
from jax.experimental.pallas import tpu as pltpu

LN_EPS = 1e-5
_INV_SQRT2 = 0.7071067811865476


def _fused_blocks_kernel(x_ref, w_ref, b_ref, g_ref, beta_ref, o_ref, *,
                         num_layers, approximate_gelu):
    # x_ref:    (tm, D)     streamed input rows (native dtype)
    # w_ref:    (L, D, D)   resident weights, pre-transposed to (in, out)
    # b_ref:    (L, D)      resident Linear biases
    # g_ref:    (L, D)      resident LayerNorm gammas
    # beta_ref: (L, D)      resident LayerNorm betas
    # o_ref:    (tm, D)     streamed output rows
    x = x_ref[...]
    for l in range(num_layers):                      # static unroll (L == 3)
        w_l = w_ref[l]                               # (D, D), already (in, out)
        # Linear on the MXU, f32 accumulation, RHS contracted on dim 0
        # (no transpose anywhere in the hot loop).
        y = lax.dot_general(
            x, w_l,
            dimension_numbers=(((1,), (0,)), ((), ())),
            preferred_element_type=jnp.float32,
        )
        y = y + b_ref[pl.ds(l, 1), :].astype(jnp.float32)

        # LayerNorm over the last dim (biased variance, eps inside rsqrt — PyTorch).
        mean = jnp.mean(y, axis=-1, keepdims=True)
        yc = y - mean
        var = jnp.mean(yc * yc, axis=-1, keepdims=True)
        ln = yc * lax.rsqrt(var + LN_EPS)
        ln = (ln * g_ref[pl.ds(l, 1), :].astype(jnp.float32)
              + beta_ref[pl.ds(l, 1), :].astype(jnp.float32))

        if approximate_gelu:
            # tanh-GELU -> EUP slot (recommended on v6e/v7x when tolerance allows).
            gelu = jax.nn.gelu(ln, approximate=True)
        else:
            # Exact erf GELU (PyTorch nn.GELU default, approximate='none').
            gelu = 0.5 * ln * (1.0 + lax.erf(ln * jnp.float32(_INV_SQRT2)))

        # Residual in f32, cast back to the layer's native dtype (PyTorch-faithful,
        # and keeps the next layer's MXU LHS in the fast native dtype).
        x = (x.astype(jnp.float32) + gelu).astype(x_ref.dtype)

    o_ref[...] = x.astype(o_ref.dtype)


def _round_up(a, m):
    return (a + m - 1) // m * m


def fused_l_blocks_forward(x, ws, bs, gammas, betas, *, tile_m=None,
                           approximate_gelu=False, min_grid_steps=2):
    """Apply L stacked l_Blocks in one fused Pallas kernel.

    x:       (..., D)
    ws:      (L, D, D) PyTorch Linear weights, (out_features, in_features)
    bs:      (L, D)    Linear biases
    gammas:  (L, D)    LayerNorm weights
    betas:   (L, D)    LayerNorm biases
    """
    ws = jnp.asarray(ws)
    bs = jnp.asarray(bs)
    gammas = jnp.asarray(gammas)
    betas = jnp.asarray(betas)
    if ws.ndim == 2:                                  # single-layer convenience
        ws, bs, gammas, betas = ws[None], bs[None], gammas[None], betas[None]

    orig_shape = x.shape
    D = orig_shape[-1]
    L = ws.shape[0]
    assert ws.shape == (L, D, D)
    assert bs.shape == (L, D) and gammas.shape == (L, D) and betas.shape == (L, D)

    # Pre-transpose ONCE (one-time 3x64 KiB XLA op): (L, out, in) -> (L, in, out).
    wt = jnp.swapaxes(ws, -1, -2)

    x2 = x.reshape(-1, D)
    M = x2.shape[0]

    itemsize = jnp.dtype(x.dtype).itemsize
    sub = {4: 8, 2: 16, 1: 32}.get(itemsize, 8)       # sublane packing per dtype
    if tile_m is None:
        tile_m = {4: 2048, 2: 4096, 1: 8192}.get(itemsize, 2048)

    # Row tile: as large as requested, clamped for tiny M, sublane-aligned.
    tm = max(sub, min(tile_m, _round_up(M, sub)))
    tm = _round_up(tm, sub)
    # Keep >= min_grid_steps grid steps when M allows, so dimension_semantics
    # ("parallel",) can actually shard across v7x's 2 TensorCores.
    if M >= min_grid_steps * sub:
        tm = min(tm, _round_up(pl.cdiv(M, min_grid_steps), sub))

    # VMEM budget: residents (x2 for buffering slack) + double-buffered x/out
    # streams + f32 epilogue temporaries (y / centered y / ln / gelu).
    w_itemsize = jnp.dtype(wt.dtype).itemsize

    def _budget(tm_):
        resident = 2 * (L * D * D + 3 * L * D) * w_itemsize
        streams = 2 * 2 * tm_ * D * itemsize
        temps = 4 * tm_ * D * 4
        return resident + streams + temps

    try:
        vmem_cap = pltpu.get_tpu_info().vmem_capacity_bytes
    except Exception:  # hw-info query only; never masks kernel/compile errors
        vmem_cap = 64 * 1024 * 1024
    vmem_ceiling = int(0.75 * vmem_cap)               # ~48 MiB on v7x, ~96 MiB v5e/v6e

    # Shrink the tile (sublane-aligned) until the budget fits the ceiling.
    while tm > sub and _budget(tm) > vmem_ceiling:
        tm = _round_up(max(sub, tm // 2), sub)

    vmem_limit = int(min(max(_budget(tm) + (4 << 20), 32 << 20), vmem_ceiling))

    # Pad ragged row counts; padded rows are computed then sliced off (correct).
    Mp = _round_up(M, tm)
    if Mp != M:
        x2 = jnp.pad(x2, ((0, Mp - M), (0, 0)))

    kernel = functools.partial(_fused_blocks_kernel, num_layers=L,
                               approximate_gelu=approximate_gelu)

    out = pl.pallas_call(
        kernel,
        out_shape=jax.ShapeDtypeStruct((Mp, D), x.dtype),
        grid_spec=pltpu.PrefetchScalarGridSpec(
            num_scalar_prefetch=0,
            grid=(Mp // tm,),
            in_specs=[
                pl.BlockSpec((tm, D), lambda i: (i, 0)),       # x rows (streamed)
                pl.BlockSpec((L, D, D), lambda i: (0, 0, 0)),  # weights (resident)
                pl.BlockSpec((L, D), lambda i: (0, 0)),        # biases
                pl.BlockSpec((L, D), lambda i: (0, 0)),        # LN gammas
                pl.BlockSpec((L, D), lambda i: (0, 0)),        # LN betas
            ],
            out_specs=pl.BlockSpec((tm, D), lambda i: (i, 0)),
        ),
        compiler_params=pltpu.CompilerParams(
            dimension_semantics=("parallel",),
            vmem_limit_bytes=vmem_limit),
    )(x2, wt, bs, gammas, betas)

    if Mp != M:
        out = out[:M]
    return out.reshape(orig_shape)


def l_block_forward(x, w, b, gamma, beta, *, tile_m=None, approximate_gelu=False):
    """Single l_Block: x + GELU(LayerNorm(Linear(x)))."""
    return fused_l_blocks_forward(x, w[None], b[None], gamma[None], beta[None],
                                  tile_m=tile_m, approximate_gelu=approximate_gelu)


def _reference(x, ws, bs, gammas, betas, approximate_gelu=False):
    """Pure-JAX reference mirroring the PyTorch l_Block stack (f32 math, native-dtype
    layer boundaries, exactly like the kernel)."""
    out = x.astype(jnp.float32)
    for l in range(ws.shape[0]):
        y = jnp.einsum("...d,od->...o", out, ws[l].astype(jnp.float32),
                       precision=lax.Precision.HIGHEST) + bs[l].astype(jnp.float32)
        mean = jnp.mean(y, axis=-1, keepdims=True)
        var = jnp.mean((y - mean) ** 2, axis=-1, keepdims=True)
        ln = (y - mean) / jnp.sqrt(var + LN_EPS)
        ln = ln * gammas[l].astype(jnp.float32) + betas[l].astype(jnp.float32)
        if approximate_gelu:
            g = jax.nn.gelu(ln, approximate=True)
        else:
            g = 0.5 * ln * (1.0 + lax.erf(ln * jnp.float32(_INV_SQRT2)))
        out = (out + g).astype(x.dtype).astype(jnp.float32)
    return out


if __name__ == "__main__":
    # MLP defaults: hidden_size=128 (lane-dense last dim), hidden_layers=3.
    B, S, D, L = 2, 8, 128, 3
    key = jax.random.PRNGKey(0)
    kx, kw, kb, kg, kbeta, kr = jax.random.split(key, 6)

    x = jax.random.normal(kx, (B, S, D), dtype=jnp.float32)
    bound = 1.0 / float(D) ** 0.5
    ws = jax.random.uniform(kw, (L, D, D), minval=-bound, maxval=bound, dtype=jnp.float32)
    bs = jax.random.uniform(kb, (L, D), minval=-bound, maxval=bound, dtype=jnp.float32)
    gammas = 1.0 + 0.01 * jax.random.normal(kg, (L, D), dtype=jnp.float32)
    betas = 0.01 * jax.random.normal(kbeta, (L, D), dtype=jnp.float32)

    # 1) Fused 3-layer f32 path (exact erf GELU, matches PyTorch semantics).
    out = jax.block_until_ready(fused_l_blocks_forward(x, ws, bs, gammas, betas))
    ref = _reference(x, ws, bs, gammas, betas)
    assert out.shape == x.shape
    assert jnp.allclose(out, ref, atol=1e-3, rtol=1e-3), "fused f32 mismatch vs reference"

    # 2) Single-block wrapper + ragged row count (exercises the padding path).
    x_r = jax.random.normal(kr, (3, 10, D), dtype=jnp.float32)
    out_r = jax.block_until_ready(
        l_block_forward(x_r, ws[0], bs[0], gammas[0], betas[0]))
    ref_r = _reference(x_r, ws[:1], bs[:1], gammas[:1], betas[:1])
    assert jnp.allclose(out_r, ref_r, atol=1e-3, rtol=1e-3), "ragged-M mismatch vs reference"

    # 3) bf16 path: native bf16 MXU operands, f32 accumulation, 16-row sublane tiles.
    xb = x.astype(jnp.bfloat16)
    wsb = ws.astype(jnp.bfloat16)
    bsb = bs.astype(jnp.bfloat16)
    gsb = gammas.astype(jnp.bfloat16)
    betasb = betas.astype(jnp.bfloat16)
    out_b = jax.block_until_ready(fused_l_blocks_forward(xb, wsb, bsb, gsb, betasb))
    ref_b = _reference(xb, wsb, bsb, gsb, betasb)
    assert jnp.allclose(out_b.astype(jnp.float32), ref_b, atol=5e-2, rtol=5e-2), \
        "bf16 mismatch vs reference"

    # 4) tanh-GELU (EUP) path, recommended on v6e/v7x when the model tolerates it;
    #    checked against a matching tanh-GELU reference.
    out_a = jax.block_until_ready(
        fused_l_blocks_forward(x, ws, bs, gammas, betas, approximate_gelu=True))
    ref_a = _reference(x, ws, bs, gammas, betas, approximate_gelu=True)
    assert jnp.allclose(out_a, ref_a, atol=1e-3, rtol=1e-3), \
        "approx-GELU mismatch vs tanh reference"

    print("KERNEL_OK")
</pallas_src>

<mosaic_0001>
module attributes {stable_mosaic.version = 11 : i64} {
  func.func @_fused_blocks_kernel(%arg0: i32, %arg1: memref<8x128xf32, #tpu.memory_space<vmem>>, %arg2: memref<3x128x128xf32, #tpu.memory_space<vmem>>, %arg3: memref<3x128xf32, #tpu.memory_space<vmem>>, %arg4: memref<3x128xf32, #tpu.memory_space<vmem>>, %arg5: memref<3x128xf32, #tpu.memory_space<vmem>>, %arg6: memref<8x128xf32, #tpu.memory_space<vmem>>) attributes {dimension_semantics = [#tpu.dimension_semantics<parallel>], iteration_bounds = array<i64: 2>, scalar_prefetch = 0 : i64, scratch_operands = 0 : i64, tpu.core_type = #tpu.core_type<tc>, window_params = [{transform_indices = @transform_0, window_bounds = array<i64: 8, 128>}, {pipeline_mode = #tpu.pipeline_mode<synchronous>, transform_indices = @transform_1, window_bounds = array<i64: 3, 128, 128>}, {pipeline_mode = #tpu.pipeline_mode<synchronous>, transform_indices = @transform_2, window_bounds = array<i64: 3, 128>}, {pipeline_mode = #tpu.pipeline_mode<synchronous>, transform_indices = @transform_3, window_bounds = array<i64: 3, 128>}, {pipeline_mode = #tpu.pipeline_mode<synchronous>, transform_indices = @transform_4, window_bounds = array<i64: 3, 128>}, {transform_indices = @transform_5, window_bounds = array<i64: 8, 128>}]} {
    %c0 = arith.constant 0 : index
    %c0_0 = arith.constant 0 : index
    %0 = vector.load %arg1[%c0, %c0_0] : memref<8x128xf32, #tpu.memory_space<vmem>>, vector<8x128xf32>
    %c0_1 = arith.constant 0 : index
    %c0_2 = arith.constant 0 : index
    %c0_3 = arith.constant 0 : index
    %1 = vector.load %arg2[%c0_1, %c0_2, %c0_3] : memref<3x128x128xf32, #tpu.memory_space<vmem>>, vector<1x128x128xf32>
    %2 = vector.shape_cast %1 : vector<1x128x128xf32> to vector<128x128xf32>
    %cst = arith.constant dense<0.000000e+00> : vector<8x128xf32>
    %3 = tpu.matmul %0, %2, %cst {dimension_numbers = #tpu.dot_dimension_numbers<[1], [0], [0], [1], [0, 0, 1, 1], [], []>} : vector<8x128xf32>, vector<128x128xf32>, vector<8x128xf32> -> vector<8x128xf32>
    %c0_4 = arith.constant 0 : index
    %c0_5 = arith.constant 0 : index
    %4 = vector.load %arg3[%c0_4, %c0_5] : memref<3x128xf32, #tpu.memory_space<vmem>>, vector<1x128xf32>
    %5 = vector.broadcast %4 : vector<1x128xf32> to vector<8x128xf32>
    %6 = arith.addf %3, %5 : vector<8x128xf32>
    %cst_6 = arith.constant dense<0.000000e+00> : vector<8xf32>
    %7 = vector.multi_reduction <add>, %6, %cst_6 [1] : vector<8x128xf32> to vector<8xf32>
    %8 = vector.shape_cast %7 : vector<8xf32> to vector<8x1xf32>
    %cst_7 = arith.constant 1.280000e+02 : f32
    %9 = vector.broadcast %cst_7 : f32 to vector<8x1xf32>
    %10 = arith.divf %8, %9 : vector<8x1xf32>
    %11 = vector.broadcast %10 : vector<8x1xf32> to vector<8x128xf32>
    %12 = arith.subf %6, %11 : vector<8x128xf32>
    %13 = arith.mulf %12, %12 : vector<8x128xf32>
    %cst_8 = arith.constant dense<0.000000e+00> : vector<8xf32>
    %14 = vector.multi_reduction <add>, %13, %cst_8 [1] : vector<8x128xf32> to vector<8xf32>
    %15 = vector.shape_cast %14 : vector<8xf32> to vector<8x1xf32>
    %cst_9 = arith.constant 1.280000e+02 : f32
    %16 = vector.broadcast %cst_9 : f32 to vector<8x1xf32>
    %17 = arith.divf %15, %16 : vector<8x1xf32>
    %cst_10 = arith.constant 9.99999974E-6 : f32
    %18 = vector.broadcast %cst_10 : f32 to vector<8x1xf32>
    %19 = arith.addf %17, %18 : vector<8x1xf32>
    %20 = math.rsqrt %19 : vector<8x1xf32>
    %21 = vector.broadcast %20 : vector<8x1xf32> to vector<8x128xf32>
    %22 = arith.mulf %12, %21 : vector<8x128xf32>
    %c0_11 = arith.constant 0 : index
    %c0_12 = arith.constant 0 : index
    %23 = vector.load %arg4[%c0_11, %c0_12] : memref<3x128xf32, #tpu.memory_space<vmem>>, vector<1x128xf32>
    %24 = vector.broadcast %23 : vector<1x128xf32> to vector<8x128xf32>
    %25 = arith.mulf %22, %24 : vector<8x128xf32>
    %c0_13 = arith.constant 0 : index
    %c0_14 = arith.constant 0 : index
    %26 = vector.load %arg5[%c0_13, %c0_14] : memref<3x128xf32, #tpu.memory_space<vmem>>, vector<1x128xf32>
    %27 = vector.broadcast %26 : vector<1x128xf32> to vector<8x128xf32>
    %28 = arith.addf %25, %27 : vector<8x128xf32>
    %cst_15 = arith.constant 5.000000e-01 : f32
    %29 = vector.broadcast %cst_15 : f32 to vector<8x128xf32>
    %30 = arith.mulf %29, %28 : vector<8x128xf32>
    %cst_16 = arith.constant 0.707106769 : f32
    %31 = vector.broadcast %cst_16 : f32 to vector<8x128xf32>
    %32 = arith.mulf %28, %31 : vector<8x128xf32>
    %33 = math.erf %32 : vector<8x128xf32>
    %cst_17 = arith.constant 1.000000e+00 : f32
    %34 = vector.broadcast %cst_17 : f32 to vector<8x128xf32>
    %35 = arith.addf %34, %33 : vector<8x128xf32>
    %36 = arith.mulf %30, %35 : vector<8x128xf32>
    %37 = arith.addf %0, %36 : vector<8x128xf32>
    %c1 = arith.constant 1 : index
    %c0_18 = arith.constant 0 : index
    %c0_19 = arith.constant 0 : index
    %38 = vector.load %arg2[%c1, %c0_18, %c0_19] : memref<3x128x128xf32, #tpu.memory_space<vmem>>, vector<1x128x128xf32>
    %39 = vector.shape_cast %38 : vector<1x128x128xf32> to vector<128x128xf32>
    %cst_20 = arith.constant dense<0.000000e+00> : vector<8x128xf32>
    %40 = tpu.matmul %37, %39, %cst_20 {dimension_numbers = #tpu.dot_dimension_numbers<[1], [0], [0], [1], [0, 0, 1, 1], [], []>} : vector<8x128xf32>, vector<128x128xf32>, vector<8x128xf32> -> vector<8x128xf32>
    %c1_21 = arith.constant 1 : index
    %c0_22 = arith.constant 0 : index
    %41 = vector.load %arg3[%c1_21, %c0_22] : memref<3x128xf32, #tpu.memory_space<vmem>>, vector<1x128xf32>
    %42 = vector.broadcast %41 : vector<1x128xf32> to vector<8x128xf32>
    %43 = arith.addf %40, %42 : vector<8x128xf32>
    %cst_23 = arith.constant dense<0.000000e+00> : vector<8xf32>
    %44 = vector.multi_reduction <add>, %43, %cst_23 [1] : vector<8x128xf32> to vector<8xf32>
    %45 = vector.shape_cast %44 : vector<8xf32> to vector<8x1xf32>
    %cst_24 = arith.constant 1.280000e+02 : f32
    %46 = vector.broadcast %cst_24 : f32 to vector<8x1xf32>
    %47 = arith.divf %45, %46 : vector<8x1xf32>
    %48 = vector.broadcast %47 : vector<8x1xf32> to vector<8x128xf32>
    %49 = arith.subf %43, %48 : vector<8x128xf32>
    %50 = arith.mulf %49, %49 : vector<8x128xf32>
    %cst_25 = arith.constant dense<0.000000e+00> : vector<8xf32>
    %51 = vector.multi_reduction <add>, %50, %cst_25 [1] : vector<8x128xf32> to vector<8xf32>
    %52 = vector.shape_cast %51 : vector<8xf32> to vector<8x1xf32>
    %cst_26 = arith.constant 1.280000e+02 : f32
    %53 = vector.broadcast %cst_26 : f32 to vector<8x1xf32>
    %54 = arith.divf %52, %53 : vector<8x1xf32>
    %cst_27 = arith.constant 9.99999974E-6 : f32
    %55 = vector.broadcast %cst_27 : f32 to vector<8x1xf32>
    %56 = arith.addf %54, %55 : vector<8x1xf32>
    %57 = math.rsqrt %56 : vector<8x1xf32>
    %58 = vector.broadcast %57 : vector<8x1xf32> to vector<8x128xf32>
    %59 = arith.mulf %49, %58 : vector<8x128xf32>
    %c1_28 = arith.constant 1 : index
    %c0_29 = arith.constant 0 : index
    %60 = vector.load %arg4[%c1_28, %c0_29] : memref<3x128xf32, #tpu.memory_space<vmem>>, vector<1x128xf32>
    %61 = vector.broadcast %60 : vector<1x128xf32> to vector<8x128xf32>
    %62 = arith.mulf %59, %61 : vector<8x128xf32>
    %c1_30 = arith.constant 1 : index
    %c0_31 = arith.constant 0 : index
    %63 = vector.load %arg5[%c1_30, %c0_31] : memref<3x128xf32, #tpu.memory_space<vmem>>, vector<1x128xf32>
    %64 = vector.broadcast %63 : vector<1x128xf32> to vector<8x128xf32>
    %65 = arith.addf %62, %64 : vector<8x128xf32>
    %cst_32 = arith.constant 5.000000e-01 : f32
    %66 = vector.broadcast %cst_32 : f32 to vector<8x128xf32>
    %67 = arith.mulf %66, %65 : vector<8x128xf32>
    %cst_33 = arith.constant 0.707106769 : f32
    %68 = vector.broadcast %cst_33 : f32 to vector<8x128xf32>
    %69 = arith.mulf %65, %68 : vector<8x128xf32>
    %70 = math.erf %69 : vector<8x128xf32>
    %cst_34 = arith.constant 1.000000e+00 : f32
    %71 = vector.broadcast %cst_34 : f32 to vector<8x128xf32>
    %72 = arith.addf %71, %70 : vector<8x128xf32>
    %73 = arith.mulf %67, %72 : vector<8x128xf32>
    %74 = arith.addf %37, %73 : vector<8x128xf32>
    %c2 = arith.constant 2 : index
    %c0_35 = arith.constant 0 : index
    %c0_36 = arith.constant 0 : index
    %75 = vector.load %arg2[%c2, %c0_35, %c0_36] : memref<3x128x128xf32, #tpu.memory_space<vmem>>, vector<1x128x128xf32>
    %76 = vector.shape_cast %75 : vector<1x128x128xf32> to vector<128x128xf32>
    %cst_37 = arith.constant dense<0.000000e+00> : vector<8x128xf32>
    %77 = tpu.matmul %74, %76, %cst_37 {dimension_numbers = #tpu.dot_dimension_numbers<[1], [0], [0], [1], [0, 0, 1, 1], [], []>} : vector<8x128xf32>, vector<128x128xf32>, vector<8x128xf32> -> vector<8x128xf32>
    %c2_38 = arith.constant 2 : index
    %c0_39 = arith.constant 0 : index
    %78 = vector.load %arg3[%c2_38, %c0_39] : memref<3x128xf32, #tpu.memory_space<vmem>>, vector<1x128xf32>
    %79 = vector.broadcast %78 : vector<1x128xf32> to vector<8x128xf32>
    %80 = arith.addf %77, %79 : vector<8x128xf32>
    %cst_40 = arith.constant dense<0.000000e+00> : vector<8xf32>
    %81 = vector.multi_reduction <add>, %80, %cst_40 [1] : vector<8x128xf32> to vector<8xf32>
    %82 = vector.shape_cast %81 : vector<8xf32> to vector<8x1xf32>
    %cst_41 = arith.constant 1.280000e+02 : f32
    %83 = vector.broadcast %cst_41 : f32 to vector<8x1xf32>
    %84 = arith.divf %82, %83 : vector<8x1xf32>
    %85 = vector.broadcast %84 : vector<8x1xf32> to vector<8x128xf32>
    %86 = arith.subf %80, %85 : vector<8x128xf32>
    %87 = arith.mulf %86, %86 : vector<8x128xf32>
    %cst_42 = arith.constant dense<0.000000e+00> : vector<8xf32>
    %88 = vector.multi_reduction <add>, %87, %cst_42 [1] : vector<8x128xf32> to vector<8xf32>
    %89 = vector.shape_cast %88 : vector<8xf32> to vector<8x1xf32>
    %cst_43 = arith.constant 1.280000e+02 : f32
    %90 = vector.broadcast %cst_43 : f32 to vector<8x1xf32>
    %91 = arith.divf %89, %90 : vector<8x1xf32>
    %cst_44 = arith.constant 9.99999974E-6 : f32
    %92 = vector.broadcast %cst_44 : f32 to vector<8x1xf32>
    %93 = arith.addf %91, %92 : vector<8x1xf32>
    %94 = math.rsqrt %93 : vector<8x1xf32>
    %95 = vector.broadcast %94 : vector<8x1xf32> to vector<8x128xf32>
    %96 = arith.mulf %86, %95 : vector<8x128xf32>
    %c2_45 = arith.constant 2 : index
    %c0_46 = arith.constant 0 : index
    %97 = vector.load %arg4[%c2_45, %c0_46] : memref<3x128xf32, #tpu.memory_space<vmem>>, vector<1x128xf32>
    %98 = vector.broadcast %97 : vector<1x128xf32> to vector<8x128xf32>
    %99 = arith.mulf %96, %98 : vector<8x128xf32>
    %c2_47 = arith.constant 2 : index
    %c0_48 = arith.constant 0 : index
    %100 = vector.load %arg5[%c2_47, %c0_48] : memref<3x128xf32, #tpu.memory_space<vmem>>, vector<1x128xf32>
    %101 = vector.broadcast %100 : vector<1x128xf32> to vector<8x128xf32>
    %102 = arith.addf %99, %101 : vector<8x128xf32>
    %cst_49 = arith.constant 5.000000e-01 : f32
    %103 = vector.broadcast %cst_49 : f32 to vector<8x128xf32>
    %104 = arith.mulf %103, %102 : vector<8x128xf32>
    %cst_50 = arith.constant 0.707106769 : f32
    %105 = vector.broadcast %cst_50 : f32 to vector<8x128xf32>
    %106 = arith.mulf %102, %105 : vector<8x128xf32>
    %107 = math.erf %106 : vector<8x128xf32>
    %cst_51 = arith.constant 1.000000e+00 : f32
    %108 = vector.broadcast %cst_51 : f32 to vector<8x128xf32>
    %109 = arith.addf %108, %107 : vector<8x128xf32>
    %110 = arith.mulf %104, %109 : vector<8x128xf32>
    %111 = arith.addf %74, %110 : vector<8x128xf32>
    %c0_52 = arith.constant 0 : index
    %c0_53 = arith.constant 0 : index
    %112 = vector.load %arg6[%c0_52, %c0_53] : memref<8x128xf32, #tpu.memory_space<vmem>>, vector<8x128xf32>
    tpu.vector_store %arg6[%c0_52, %c0_53], %111 {strides = array<i32>} : memref<8x128xf32, #tpu.memory_space<vmem>>, vector<8x128xf32>,
    return
  }
  func.func @transform_0(%arg0: i32) -> (i32, i32) {
    %c0_i32 = arith.constant 0 : i32
    %c0_i32_0 = arith.constant 0 : i32
    return %arg0, %c0_i32 : i32, i32
  }
  func.func @transform_1(%arg0: i32) -> (i32, i32, i32) {
    %c0_i32 = arith.constant 0 : i32
    %c0_i32_0 = arith.constant 0 : i32
    %c0_i32_1 = arith.constant 0 : i32
    %c0_i32_2 = arith.constant 0 : i32
    return %c0_i32, %c0_i32_0, %c0_i32_1 : i32, i32, i32
  }
  func.func @transform_2(%arg0: i32) -> (i32, i32) {
    %c0_i32 = arith.constant 0 : i32
    %c0_i32_0 = arith.constant 0 : i32
    %c0_i32_1 = arith.constant 0 : i32
    return %c0_i32, %c0_i32_0 : i32, i32
  }
  func.func @transform_3(%arg0: i32) -> (i32, i32) {
    %c0_i32 = arith.constant 0 : i32
    %c0_i32_0 = arith.constant 0 : i32
    %c0_i32_1 = arith.constant 0 : i32
    return %c0_i32, %c0_i32_0 : i32, i32
  }
  func.func @transform_4(%arg0: i32) -> (i32, i32) {
    %c0_i32 = arith.constant 0 : i32
    %c0_i32_0 = arith.constant 0 : i32
    %c0_i32_1 = arith.constant 0 : i32
    return %c0_i32, %c0_i32_0 : i32, i32
  }
  func.func @transform_5(%arg0: i32) -> (i32, i32) {
    %c0_i32 = arith.constant 0 : i32
    %c0_i32_0 = arith.constant 0 : i32
    return %arg0, %c0_i32 : i32, i32
  }
}

</mosaic_0001>

<llo_original>
// kernel: tpu_custom_call.1
$region0: #{tpu_custom_call.1}
  #allocation0 [shape = 'u32[]', space=smem, size = 0x4, offset = 0x4, fixed_abs, tag = 'smem constant byte address 0x4 - core index']
  #allocation1 [shape = 'u32[144,128]{1,0:T(1,128)}', space=vmem, size = 0x12000, scoped, tag = 'internal scratch']
  %s0 = inlined_call_operand.hbm [shape: f32[16,128], index: 0, kind: input, shape index: {}]
  %s1 = inlined_call_operand.hbm [shape: f32[3,128,128], index: 1, kind: input, shape index: {}]
  %s2 = inlined_call_operand.vmem [shape: f32[3,128], index: 2, kind: input, shape index: {}]
  %s3 = inlined_call_operand.vmem [shape: f32[3,128], index: 3, kind: input, shape index: {}]
  %s4 = inlined_call_operand.vmem [shape: f32[3,128], index: 4, kind: input, shape index: {}]
  %s5 = inlined_call_operand.hbm [shape: f32[16,128], index: 5, kind: output, shape index: {}]
  %s6 = sld [smem:[#allocation0]]
  $region61: #{tpu_custom_call.1} parent=0
    _
  %s8 = ssub.s32 1, %s6
  %s9 = scalar_select 0, %s8, %s6
  $region1: #{tpu_custom_call.1} parent=0
    #allocation2 [shape = 'u8[8192]{0}', space=vmem, size = 0x2000, scoped, tag = 'input window, operand 0']
    #allocation3 [shape = 's32[2]{0}', space=sflag, size = 0x8, scoped, tag = 'scoped memory for tpu_custom_call.1']
    #allocation4 [shape = 's32[2]{0}', space=sflag, size = 0x8, scoped, tag = 'scoped memory for tpu_custom_call.1']
    #allocation5 [shape = 'u8[196608]{0}', space=vmem, size = 0x30000, scoped, tag = 'input window, operand 1, single buffered']
    #allocation6 [shape = 's32[1]{0}', space=sflag, size = 0x4, scoped, tag = 'scoped memory for tpu_custom_call.1']
    #allocation7 [shape = 'u8[8192]{0}', space=vmem, size = 0x2000, scoped, tag = 'output window, operand 0']
    %10 = vsyncpa [#allocation3], 0
    %s11 = scalar_lea.sflag [#allocation3], 1
    %12 = vsyncpa %s11, 0
    %13 = vsyncpa [#allocation6], 0
    %14 = vsyncpa [#allocation4], 0
    %s15 = scalar_lea.sflag [#allocation4], 1
    %16 = vsyncpa %s15, 0
    loop: start=0, step=1, limit=4
    $region2: #{tpu_custom_call.1} parent=1 // loop_pre_header
      _
    $region3: #{tpu_custom_call.1} parent=1 // loop_header
      %s18 = sphi 0, %s22
      %p19 = scmp.ge.s32.totalorder %s18, 4
      %s28 = sphi 0, %s30
      %s31 = sphi 0, %s28
      %s32 = sphi 0, %s31
      %s48 = sphi 0, %s32
      %s52 = sphi 0, %s52
      %s54 = sphi 0, %s52
      %s55 = sphi 0, %s54
      %s69 = sphi 0, %s55
      %s73 = sphi 0, %s73
      %s75 = sphi 0, %s73
      %s76 = sphi 0, %s75
      %s90 = sphi 0, %s76
      %s94 = sphi 0, %s94
      %s96 = sphi 0, %s94
      %s97 = sphi 0, %s96
      %s111 = sphi 0, %s97
      %s115 = sphi 0, %s115
      %s117 = sphi 0, %s115
      %s118 = sphi 0, %s117
      %s132 = sphi 0, %s118
      %s138 = sphi 0, %s140
      %s141 = sphi 0, %s138
      %s142 = sphi 0, %s141
      %s158 = sphi 0, %s142
    $region4: #{tpu_custom_call.1} parent=1 // loop_header_branch
      %21 = sbr.rel (%p19) target = $region8
    $region5: #{tpu_custom_call.1} parent=1 // loop_body
      %s23 = ssub.s32 %s18, 1
      %s24 = ssub.s32 %s18, 2
      %s25 = sadd.s32 %s18, 1
      %s26 = ssub.s32 %s18, %s25
      %p27 = scmp.eq.s32.totalorder %s26, 0
      %s29 = sadd.s32 %s28, 1
      %s30 = scalar_select %p27, %s28, %s29
      %p33 = pneg %p27
      %p34 = scmp.eq.s32.totalorder %s18, 1
      %p35 = por %p33, %p34
      %p36 = scmp.ne.s32.totalorder %s28, %s31
      %p37 = scmp.eq.s32.totalorder %s18, 0
      %p38 = por %p36, %p37
      %p39 = scmp.ne.s32.totalorder %s28, %s31
      %p40 = scmp.eq.s32.totalorder %s23, 1
      %p41 = por %p39, %p40
      %p42 = scmp.ne.s32.totalorder %s31, %s32
      %p43 = scmp.eq.s32.totalorder %s23, 0
      %p44 = por %p42, %p43
      %p45 = scmp.ne.s32.totalorder %s31, %s32
      %p46 = scmp.eq.s32.totalorder %s24, 1
      %p47 = por %p45, %p46
      %p49 = scmp.ne.s32.totalorder %s32, %s48
      %p50 = scmp.eq.s32.totalorder %s24, 0
      %p51 = por %p49, %p50
      %s53 = sadd.s32 %s52, 1
      %p56 = scmp.eq.s32.totalorder %s18, 1
      %p57 = scmp.ne.s32.totalorder %s52, %s54
      %p58 = scmp.eq.s32.totalorder %s18, 0
      %p59 = por %p57, %p58
      %p60 = scmp.ne.s32.totalorder %s52, %s54
      %p61 = scmp.eq.s32.totalorder %s23, 1
      %p62 = por %p60, %p61
      %p63 = scmp.ne.s32.totalorder %s54, %s55
      %p64 = scmp.eq.s32.totalorder %s23, 0
      %p65 = por %p63, %p64
      %p66 = scmp.ne.s32.totalorder %s54, %s55
      %p67 = scmp.eq.s32.totalorder %s24, 1
      %p68 = por %p66, %p67
      %p70 = scmp.ne.s32.totalorder %s55, %s69
      %p71 = scmp.eq.s32.totalorder %s24, 0
      %p72 = por %p70, %p71
      %s74 = sadd.s32 %s73, 1
      %p77 = scmp.eq.s32.totalorder %s18, 1
      %p78 = scmp.ne.s32.totalorder %s73, %s75
      %p79 = scmp.eq.s32.totalorder %s18, 0
      %p80 = por %p78, %p79
      %p81 = scmp.ne.s32.totalorder %s73, %s75
      %p82 = scmp.eq.s32.totalorder %s23, 1
      %p83 = por %p81, %p82
      %p84 = scmp.ne.s32.totalorder %s75, %s76
      %p85 = scmp.eq.s32.totalorder %s23, 0
      %p86 = por %p84, %p85
      %p87 = scmp.ne.s32.totalorder %s75, %s76
      %p88 = scmp.eq.s32.totalorder %s24, 1
      %p89 = por %p87, %p88
      %p91 = scmp.ne.s32.totalorder %s76, %s90
      %p92 = scmp.eq.s32.totalorder %s24, 0
      %p93 = por %p91, %p92
      %s95 = sadd.s32 %s94, 1
      %p98 = scmp.eq.s32.totalorder %s18, 1
      %p99 = scmp.ne.s32.totalorder %s94, %s96
      %p100 = scmp.eq.s32.totalorder %s18, 0
      %p101 = por %p99, %p100
      %p102 = scmp.ne.s32.totalorder %s94, %s96
      %p103 = scmp.eq.s32.totalorder %s23, 1
      %p104 = por %p102, %p103
      %p105 = scmp.ne.s32.totalorder %s96, %s97
      %p106 = scmp.eq.s32.totalorder %s23, 0
      %p107 = por %p105, %p106
      %p108 = scmp.ne.s32.totalorder %s96, %s97
      %p109 = scmp.eq.s32.totalorder %s24, 1
      %p110 = por %p108, %p109
      %p112 = scmp.ne.s32.totalorder %s97, %s111
      %p113 = scmp.eq.s32.totalorder %s24, 0
      %p114 = por %p112, %p113
      %s116 = sadd.s32 %s115, 1
      %p119 = scmp.eq.s32.totalorder %s18, 1
      %p120 = scmp.ne.s32.totalorder %s115, %s117
      %p121 = scmp.eq.s32.totalorder %s18, 0
      %p122 = por %p120, %p121
      %p123 = scmp.ne.s32.totalorder %s115, %s117
      %p124 = scmp.eq.s32.totalorder %s23, 1
      %p125 = por %p123, %p124
      %p126 = scmp.ne.s32.totalorder %s117, %s118
      %p127 = scmp.eq.s32.totalorder %s23, 0
      %p128 = por %p126, %p127
      %p129 = scmp.ne.s32.totalorder %s117, %s118
      %p130 = scmp.eq.s32.totalorder %s24, 1
      %p131 = por %p129, %p130
      %p133 = scmp.ne.s32.totalorder %s118, %s132
      %p134 = scmp.eq.s32.totalorder %s24, 0
      %p135 = por %p133, %p134
      %s136 = ssub.s32 %s18, %s25
      %p137 = scmp.eq.s32.totalorder %s136, 0
      %s139 = sadd.s32 %s138, 1
      %s140 = scalar_select %p137, %s138, %s139
      %p143 = pneg %p137
      %p144 = scmp.eq.s32.totalorder %s18, 1
      %p145 = por %p143, %p144
      %p146 = scmp.ne.s32.totalorder %s138, %s141
      %p147 = scmp.eq.s32.totalorder %s18, 0
      %p148 = por %p146, %p147
      %p149 = scmp.ne.s32.totalorder %s138, %s141
      %p150 = scmp.eq.s32.totalorder %s23, 1
      %p151 = por %p149, %p150
      %p152 = scmp.ne.s32.totalorder %s141, %s142
      %p153 = scmp.eq.s32.totalorder %s23, 0
      %p154 = por %p152, %p153
      %p155 = scmp.ne.s32.totalorder %s141, %s142
      %p156 = scmp.eq.s32.totalorder %s24, 1
      %p157 = por %p155, %p156
      %p159 = scmp.ne.s32.totalorder %s142, %s158
      %p160 = scmp.eq.s32.totalorder %s24, 0
      %p161 = por %p159, %p160
      %p162 = scmp.le.s32.totalorder 1, %s18
      %p163 = scmp.lt.s32.totalorder %s18, 3
      %p164 = pnand %p162, %p163
      %p165 = pneg %p164
      // Predicated region
      $region9: #{tpu_custom_call.1} parent=5 // pred_check
        _
      $region10: #{tpu_custom_call.1} parent=5 // pred_check_branch
        %167 = sbr.rel (%p164) target = $region12
      $region11: #{tpu_custom_call.1} parent=5 // pred_region
        %s168 = ssub.s32 %s18, 1
        // Predicated region
        $region13: #{tpu_custom_call.1} parent=11 // pred_check
          %p169 = pneg %p65
        $region14: #{tpu_custom_call.1} parent=11 // pred_check_branch
          %171 = sbr.rel (%p169) target = $region16
        $region15: #{tpu_custom_call.1} parent=11 // pred_region
          %s173 = ssub.s32 6144, 6144
          %174 = vsyncadd [#allocation6], %s173
          %s175 = sshll.u32 [#allocation5], 4
          %s176 = int_to_ptr.vmem [resolvable:$true] %s175
          %181 = dma.hbm_to_vmem [thread:$0]  %s1, 6144, %s176, [#allocation6], 128, 128, 8
        $region16: #{tpu_custom_call.1} parent=11 // pred_fallthru
          _
        // Predicated region
        $region17: #{tpu_custom_call.1} parent=11 // pred_check
          %p182 = pneg %p86
        $region18: #{tpu_custom_call.1} parent=11 // pred_check_branch
          %184 = sbr.rel (%p182) target = $region20
        $region19: #{tpu_custom_call.1} parent=11 // pred_region
          _
        $region20: #{tpu_custom_call.1} parent=11 // pred_fallthru
          _
        // Predicated region
        $region21: #{tpu_custom_call.1} parent=11 // pred_check
          %p185 = pneg %p107
        $region22: #{tpu_custom_call.1} parent=11 // pred_check_branch
          %187 = sbr.rel (%p185) target = $region24
        $region23: #{tpu_custom_call.1} parent=11 // pred_region
          _
        $region24: #{tpu_custom_call.1} parent=11 // pred_fallthru
          _
        // Predicated region
        $region25: #{tpu_custom_call.1} parent=11 // pred_check
          %p188 = pneg %p128
        $region26: #{tpu_custom_call.1} parent=11 // pred_check_branch
          %190 = sbr.rel (%p188) target = $region28
        $region27: #{tpu_custom_call.1} parent=11 // pred_region
          _
        $region28: #{tpu_custom_call.1} parent=11 // pred_fallthru
          _
      $region12: #{tpu_custom_call.1} parent=5 // pred_fallthru
        _
      %p191 = scmp.lt.s32.totalorder %s18, 2
      // Predicated region
      $region29: #{tpu_custom_call.1} parent=5 // pred_check
        %p192 = pneg %p191
      $region30: #{tpu_custom_call.1} parent=5 // pred_check_branch
        %194 = sbr.rel (%p192) target = $region32
      $region31: #{tpu_custom_call.1} parent=5 // pred_region
        // Predicated region
        $region33: #{tpu_custom_call.1} parent=31 // pred_check
          %p195 = pneg %p38
        $region34: #{tpu_custom_call.1} parent=31 // pred_check_branch
          %197 = sbr.rel (%p195) target = $region36
        $region35: #{tpu_custom_call.1} parent=31 // pred_region
          %s198 = sand.u32 %s28, 1
          %s199 = scalar_lea.sflag [#allocation3], %s198
          %s200 = sand.u32 %s28, 1
          %s201 = smul.addr %s200, 8
          %s202 = scalar_lea.vmem [#allocation2], %s201
          %s204 = ssub.s32 128, 128
          %205 = vsyncadd %s199, %s204
          %s206 = smul.addr %s18, 128
          %s207 = scalar_lea.hbm %s0, %s206
          %s209 = sshll.u32 %s202, 4
          %s210 = int_to_ptr.vmem [resolvable:$true] %s209
          %212 = dma.hbm_to_vmem [thread:$0]  %s207, 128, %s210, %s199
        $region36: #{tpu_custom_call.1} parent=31 // pred_fallthru
          _
      $region32: #{tpu_custom_call.1} parent=5 // pred_fallthru
        _
      %p213 = scmp.le.s32.totalorder 1, %s18
      %p214 = scmp.lt.s32.totalorder %s18, 3
      %p215 = pnand %p213, %p214
      %p216 = pneg %p215
      // Predicated region
      $region37: #{tpu_custom_call.1} parent=5 // pred_check
        _
      $region38: #{tpu_custom_call.1} parent=5 // pred_check_branch
        %218 = sbr.rel (%p215) target = $region40
      $region39: #{tpu_custom_call.1} parent=5 // pred_region
        %s219 = ssub.s32 %s18, 1
        %s220 = sand.u32 %s31, 1
        %s221 = scalar_lea.sflag [#allocation3], %s220
        %s222 = sand.u32 %s31, 1
        %s223 = smul.addr %s222, 8
        %s224 = scalar_lea.vmem [#allocation2], %s223
        // Predicated region
        $region41: #{tpu_custom_call.1} parent=39 // pred_check
          %p225 = pneg %p44
        $region42: #{tpu_custom_call.1} parent=39 // pred_check_branch
          %227 = sbr.rel (%p225) target = $region44
        $region43: #{tpu_custom_call.1} parent=39 // pred_region
          %228 = dma.done %s221, 128
        $region44: #{tpu_custom_call.1} parent=39 // pred_fallthru
          _
        // Predicated region
        $region45: #{tpu_custom_call.1} parent=39 // pred_check
          %p229 = pneg %p65
        $region46: #{tpu_custom_call.1} parent=39 // pred_check_branch
          %231 = sbr.rel (%p229) target = $region48
        $region47: #{tpu_custom_call.1} parent=39 // pred_region
          %232 = dma.done [#allocation6], 6144
        $region48: #{tpu_custom_call.1} parent=39 // pred_fallthru
          _
        %s233 = sand.u32 %s31, 1
        %s234 = scalar_lea.sflag [#allocation3], %s233
        %s235 = sand.u32 %s31, 1
        %s236 = smul.addr %s235, 8
        %s237 = scalar_lea.vmem [#allocation2], %s236
        %p238 = pneg %p44
        %p239 = pneg %p41
        %p240 = pneg %p65
        %p241 = pneg %p62
        %p242 = pneg %p86
        %p243 = pneg %p83
        %p244 = pneg %p107
        %p245 = pneg %p104
        %p246 = pneg %p128
        %p247 = pneg %p125
        %p248 = pneg %p154
        %p249 = pneg %p151
        %s250 = sand.u32 %s141, 1
        %s251 = scalar_lea.sflag [#allocation4], %s250
        %s252 = sand.u32 %s141, 1
        %s253 = smul.addr %s252, 8
        %s254 = scalar_lea.vmem [#allocation7], %s253
        %v255 = vld [vmem:[%s224] sm:$0xff]
        %v256 = vld [vmem:[#allocation5] sm:$0xff]
        %v257 = vld [vmem:[#allocation5 + $0x8] sm:$0xff]
        %v258 = vld [vmem:[#allocation5 + $0x10] sm:$0xff]
        %v259 = vld [vmem:[#allocation5 + $0x18] sm:$0xff]
        %v260 = vld [vmem:[#allocation5 + $0x20] sm:$0xff]
        %v261 = vld [vmem:[#allocation5 + $0x28] sm:$0xff]
        %v262 = vld [vmem:[#allocation5 + $0x30] sm:$0xff]
        %v263 = vld [vmem:[#allocation5 + $0x38] sm:$0xff]
        %v264 = vld [vmem:[#allocation5 + $0x40] sm:$0xff]
        %v265 = vld [vmem:[#allocation5 + $0x48] sm:$0xff]
        %v266 = vld [vmem:[#allocation5 + $0x50] sm:$0xff]
        %v267 = vld [vmem:[#allocation5 + $0x58] sm:$0xff]
        %v268 = vld [vmem:[#allocation5 + $0x60] sm:$0xff]
        %v269 = vld [vmem:[#allocation5 + $0x68] sm:$0xff]
        %v270 = vld [vmem:[#allocation5 + $0x70] sm:$0xff]
        %v271 = vld [vmem:[#allocation5 + $0x78] sm:$0xff]
        %v272 = vld [vmem:[%s2] sm:$0x1]
        %v273 = vlaneseq
        %v274 = vshrl.u32 %v273, 7
        %v275 = vsub.s32 0, %v274
        %v276 = vrot.slane %v272, %v275
        %277 = vmatprep.subr.mxu0 0.0
        %278 = vmatpush1.msra.mxu0 %v256
        %279 = vmatprep.subr.mxu0 0.0
        %280 = vmatpush1.msra.mxu0 %v257
        %281 = vmatprep.subr.mxu0 0.0
        %282 = vmatpush1.msra.mxu0 %v258
        %283 = vmatprep.subr.mxu0 0.0
        %284 = vmatpush1.msra.mxu0 %v259
        %285 = vmatprep.subr.mxu0 0.0
        %286 = vmatpush1.msra.mxu0 %v260
        %287 = vmatprep.subr.mxu0 0.0
        %288 = vmatpush1.msra.mxu0 %v261
        %289 = vmatprep.subr.mxu0 0.0
        %290 = vmatpush1.msra.mxu0 %v262
        %291 = vmatprep.subr.mxu0 0.0
        %292 = vmatpush1.msra.mxu0 %v263
        %293 = vmatprep.subr.mxu0 0.0
        %294 = vmatpush1.msra.mxu0 %v264
        %295 = vmatprep.subr.mxu0 0.0
        %296 = vmatpush1.msra.mxu0 %v265
        %297 = vmatprep.subr.mxu0 0.0
        %298 = vmatpush1.msra.mxu0 %v266
        %299 = vmatprep.subr.mxu0 0.0
        %300 = vmatpush1.msra.mxu0 %v267
        %301 = vmatprep.subr.mxu0 0.0
        %302 = vmatpush1.msra.mxu0 %v268
        %303 = vmatprep.subr.mxu0 0.0
        %304 = vmatpush1.msra.mxu0 %v269
        %305 = vmatprep.subr.mxu0 0.0
        %306 = vmatpush1.msra.mxu0 %v270
        %307 = vmatprep.subr.mxu0 0.0
        %308 = vmatpush1.msra.mxu0 %v271
        %309 = vmatprep.subr.mxu0 0.0
        %310 = vmatpush1.msra.mxu0 0.0
        %311 = vmatprep.subr.mxu0 0.0
        %312 = vmatpush1.msra.mxu0 0.0
        %313 = vmatprep.subr.mxu0 0.0
        %314 = vmatpush1.msra.mxu0 0.0
        %315 = vmatprep.subr.mxu0 0.0
        %316 = vmatpush1.msra.mxu0 0.0
        %317 = vmatprep.subr.mxu0 0.0
        %318 = vmatpush1.msra.mxu0 0.0
        %319 = vmatprep.subr.mxu0 0.0
        %320 = vmatpush1.msra.mxu0 0.0
        %321 = vmatprep.subr.mxu0 0.0
        %322 = vmatpush1.msra.mxu0 0.0
        %323 = vmatprep.subr.mxu0 0.0
        %324 = vmatpush1.msra.mxu0 0.0
        %325 = vmatprep.subr.mxu0 0.0
        %326 = vmatpush1.msra.mxu0 0.0
        %327 = vmatprep.subr.mxu0 0.0
        %328 = vmatpush1.msra.mxu0 0.0
        %329 = vmatprep.subr.mxu0 0.0
        %330 = vmatpush1.msra.mxu0 0.0
        %331 = vmatprep.subr.mxu0 0.0
        %332 = vmatpush1.msra.mxu0 0.0
        %333 = vmatprep.subr.mxu0 0.0
        %334 = vmatpush1.msra.mxu0 0.0
        %335 = vmatprep.subr.mxu0 0.0
        %336 = vmatpush1.msra.mxu0 0.0
        %337 = vmatprep.subr.mxu0 0.0
        %338 = vmatpush1.msra.mxu0 0.0
        %339 = vmatprep.subr.mxu0 0.0
        %340 = vmatpush1.msra.mxu0 0.0
        %341 = vmatprep.mubr.f32.mxu0 0.0
        %342 = vmatmul.mubr.f32.gmra.mrb[0].mxu0 %v255
        %v343 = vpop.f32.mrb[0].mxu0
        %v344 = vadd.f32 %v276, %v343
        %v345 = vpop.f32.mrb[0].mxu0
        %346 = vdwg.mxu0
        %347 = vadd.xlane.f32.xlu0 %v344
        %v348 = vpop.xlane.xlu0 %347
        %v349 = vrcp.pop 128.0
        %v350 = vmul.f32 %v348, %v349
        %v351 = vsub.f32 %v344, %v350
        %v352 = vmul.f32 %v351, %v351
        %353 = vadd.xlane.f32.xlu0 %v352
        %v354 = vpop.xlane.xlu0 %353
        %v355 = vmul.f32 %v354, %v349
        %v356 = vadd.f32 %v355, 1e-05
        %v357 = vrsqrt.pop %v356
        %v358 = vmul.f32 %v351, %v357
        %v359 = vld [vmem:[%s3] sm:$0x1]
        %v360 = vlaneseq
        %v361 = vshrl.u32 %v360, 7
        %v362 = vsub.s32 0, %v361
        %v363 = vrot.slane %v359, %v362
        %v364 = vmul.f32 %v358, %v363
        %v365 = vld [vmem:[%s4] sm:$0x1]
        %v366 = vlaneseq
        %v367 = vshrl.u32 %v366, 7
        %v368 = vsub.s32 0, %v367
        %v369 = vrot.slane %v365, %v368
        %v370 = vadd.f32 %v364, %v369
        %v371 = vmul.f32 %v370, 0.5
        %v372 = vmul.f32 %v370, 0.70710677
        %v373 = verf.f32.pop %v372
        %v374 = vadd.f32 %v373, 1.0
        %v375 = vmul.f32 %v371, %v374
        %v376 = vadd.f32 %v255, %v375
        %s377 = scalar_lea.vmem [#allocation5], 128
        %v378 = vld [vmem:[%s377] sm:$0xff]
        %v379 = vld [vmem:[%s377 + $0x8] sm:$0xff]
        %v380 = vld [vmem:[%s377 + $0x10] sm:$0xff]
        %v381 = vld [vmem:[%s377 + $0x18] sm:$0xff]
        %v382 = vld [vmem:[%s377 + $0x20] sm:$0xff]
        %v383 = vld [vmem:[%s377 + $0x28] sm:$0xff]
        %v384 = vld [vmem:[%s377 + $0x30] sm:$0xff]
        %v385 = vld [vmem:[%s377 + $0x38] sm:$0xff]
        %v386 = vld [vmem:[%s377 + $0x40] sm:$0xff]
        %v387 = vld [vmem:[%s377 + $0x48] sm:$0xff]
        %v388 = vld [vmem:[%s377 + $0x50] sm:$0xff]
        %v389 = vld [vmem:[%s377 + $0x58] sm:$0xff]
        %v390 = vld [vmem:[%s377 + $0x60] sm:$0xff]
        %v391 = vld [vmem:[%s377 + $0x68] sm:$0xff]
        %v392 = vld [vmem:[%s377 + $0x70] sm:$0xff]
        %v393 = vld [vmem:[%s377 + $0x78] sm:$0xff]
        %v394 = vld [vmem:[%s2 + $0x1] sm:$0x1]
        %v395 = vlaneseq
        %v396 = vshrl.u32 %v395, 7
        %v397 = vsub.s32 0, %v396
        %v398 = vrot.slane %v394, %v397
        %399 = vmatprep.subr.mxu0 0.0
        %400 = vmatpush1.msra.mxu0 %v378
        %401 = vmatprep.subr.mxu0 0.0
        %402 = vmatpush1.msra.mxu0 %v379
        %403 = vmatprep.subr.mxu0 0.0
        %404 = vmatpush1.msra.mxu0 %v380
        %405 = vmatprep.subr.mxu0 0.0
        %406 = vmatpush1.msra.mxu0 %v381
        %407 = vmatprep.subr.mxu0 0.0
        %408 = vmatpush1.msra.mxu0 %v382
        %409 = vmatprep.subr.mxu0 0.0
        %410 = vmatpush1.msra.mxu0 %v383
        %411 = vmatprep.subr.mxu0 0.0
        %412 = vmatpush1.msra.mxu0 %v384
        %413 = vmatprep.subr.mxu0 0.0
        %414 = vmatpush1.msra.mxu0 %v385
        %415 = vmatprep.subr.mxu0 0.0
        %416 = vmatpush1.msra.mxu0 %v386
        %417 = vmatprep.subr.mxu0 0.0
        %418 = vmatpush1.msra.mxu0 %v387
        %419 = vmatprep.subr.mxu0 0.0
        %420 = vmatpush1.msra.mxu0 %v388
        %421 = vmatprep.subr.mxu0 0.0
        %422 = vmatpush1.msra.mxu0 %v389
        %423 = vmatprep.subr.mxu0 0.0
        %424 = vmatpush1.msra.mxu0 %v390
        %425 = vmatprep.subr.mxu0 0.0
        %426 = vmatpush1.msra.mxu0 %v391
        %427 = vmatprep.subr.mxu0 0.0
        %428 = vmatpush1.msra.mxu0 %v392
        %429 = vmatprep.subr.mxu0 0.0
        %430 = vmatpush1.msra.mxu0 %v393
        %431 = vmatprep.subr.mxu0 0.0
        %432 = vmatpush1.msra.mxu0 0.0
        %433 = vmatprep.subr.mxu0 0.0
        %434 = vmatpush1.msra.mxu0 0.0
        %435 = vmatprep.subr.mxu0 0.0
        %436 = vmatpush1.msra.mxu0 0.0
        %437 = vmatprep.subr.mxu0 0.0
        %438 = vmatpush1.msra.mxu0 0.0
        %439 = vmatprep.subr.mxu0 0.0
        %440 = vmatpush1.msra.mxu0 0.0
        %441 = vmatprep.subr.mxu0 0.0
        %442 = vmatpush1.msra.mxu0 0.0
        %443 = vmatprep.subr.mxu0 0.0
        %444 = vmatpush1.msra.mxu0 0.0
        %445 = vmatprep.subr.mxu0 0.0
        %446 = vmatpush1.msra.mxu0 0.0
        %447 = vmatprep.subr.mxu0 0.0
        %448 = vmatpush1.msra.mxu0 0.0
        %449 = vmatprep.subr.mxu0 0.0
        %450 = vmatpush1.msra.mxu0 0.0
        %451 = vmatprep.subr.mxu0 0.0
        %452 = vmatpush1.msra.mxu0 0.0
        %453 = vmatprep.subr.mxu0 0.0
        %454 = vmatpush1.msra.mxu0 0.0
        %455 = vmatprep.subr.mxu0 0.0
        %456 = vmatpush1.msra.mxu0 0.0
        %457 = vmatprep.subr.mxu0 0.0
        %458 = vmatpush1.msra.mxu0 0.0
        %459 = vmatprep.subr.mxu0 0.0
        %460 = vmatpush1.msra.mxu0 0.0
        %461 = vmatprep.subr.mxu0 0.0
        %462 = vmatpush1.msra.mxu0 0.0
        %463 = vmatprep.mubr.f32.mxu0 0.0
        %464 = vmatmul.mubr.f32.gmra.mrb[0].mxu0 %v376
        %v465 = vpop.f32.mrb[0].mxu0
        %v466 = vadd.f32 %v398, %v465
        %v467 = vpop.f32.mrb[0].mxu0
        %468 = vdwg.mxu0
        %469 = vadd.xlane.f32.xlu0 %v466
        %v470 = vpop.xlane.xlu0 %469
        %v471 = vmul.f32 %v470, %v349
        %v472 = vsub.f32 %v466, %v471
        %v473 = vmul.f32 %v472, %v472
        %474 = vadd.xlane.f32.xlu0 %v473
        %v475 = vpop.xlane.xlu0 %474
        %v476 = vmul.f32 %v475, %v349
        %v477 = vadd.f32 %v476, 1e-05
        %v478 = vrsqrt.pop %v477
        %v479 = vmul.f32 %v472, %v478
        %v480 = vld [vmem:[%s3 + $0x1] sm:$0x1]
        %v481 = vlaneseq
        %v482 = vshrl.u32 %v481, 7
        %v483 = vsub.s32 0, %v482
        %v484 = vrot.slane %v480, %v483
        %v485 = vmul.f32 %v479, %v484
        %v486 = vld [vmem:[%s4 + $0x1] sm:$0x1]
        %v487 = vlaneseq
        %v488 = vshrl.u32 %v487, 7
        %v489 = vsub.s32 0, %v488
        %v490 = vrot.slane %v486, %v489
        %v491 = vadd.f32 %v485, %v490
        %v492 = vmul.f32 %v491, 0.5
        %v493 = vmul.f32 %v491, 0.70710677
        %v494 = verf.f32.pop %v493
        %v495 = vadd.f32 %v494, 1.0
        %v496 = vmul.f32 %v492, %v495
        %v497 = vadd.f32 %v376, %v496
        %s498 = scalar_lea.vmem [#allocation5], 256
        %v499 = vld [vmem:[%s498] sm:$0xff]
        %v500 = vld [vmem:[%s498 + $0x8] sm:$0xff]
        %v501 = vld [vmem:[%s498 + $0x10] sm:$0xff]
        %v502 = vld [vmem:[%s498 + $0x18] sm:$0xff]
        %v503 = vld [vmem:[%s498 + $0x20] sm:$0xff]
        %v504 = vld [vmem:[%s498 + $0x28] sm:$0xff]
        %v505 = vld [vmem:[%s498 + $0x30] sm:$0xff]
        %v506 = vld [vmem:[%s498 + $0x38] sm:$0xff]
        %v507 = vld [vmem:[%s498 + $0x40] sm:$0xff]
        %v508 = vld [vmem:[%s498 + $0x48] sm:$0xff]
        %v509 = vld [vmem:[%s498 + $0x50] sm:$0xff]
        %v510 = vld [vmem:[%s498 + $0x58] sm:$0xff]
        %v511 = vld [vmem:[%s498 + $0x60] sm:$0xff]
        %v512 = vld [vmem:[%s498 + $0x68] sm:$0xff]
        %v513 = vld [vmem:[%s498 + $0x70] sm:$0xff]
        %v514 = vld [vmem:[%s498 + $0x78] sm:$0xff]
        %v515 = vld [vmem:[%s2 + $0x2] sm:$0x1]
        %v516 = vlaneseq
        %v517 = vshrl.u32 %v516, 7
        %v518 = vsub.s32 0, %v517
        %v519 = vrot.slane %v515, %v518
        %520 = vmatprep.subr.mxu0 0.0
        %521 = vmatpush1.msra.mxu0 %v499
        %522 = vmatprep.subr.mxu0 0.0
        %523 = vmatpush1.msra.mxu0 %v500
        %524 = vmatprep.subr.mxu0 0.0
        %525 = vmatpush1.msra.mxu0 %v501
        %526 = vmatprep.subr.mxu0 0.0
        %527 = vmatpush1.msra.mxu0 %v502
        %528 = vmatprep.subr.mxu0 0.0
        %529 = vmatpush1.msra.mxu0 %v503
        %530 = vmatprep.subr.mxu0 0.0
        %531 = vmatpush1.msra.mxu0 %v504
        %532 = vmatprep.subr.mxu0 0.0
        %533 = vmatpush1.msra.mxu0 %v505
        %534 = vmatprep.subr.mxu0 0.0
        %535 = vmatpush1.msra.mxu0 %v506
        %536 = vmatprep.subr.mxu0 0.0
        %537 = vmatpush1.msra.mxu0 %v507
        %538 = vmatprep.subr.mxu0 0.0
        %539 = vmatpush1.msra.mxu0 %v508
        %540 = vmatprep.subr.mxu0 0.0
        %541 = vmatpush1.msra.mxu0 %v509
        %542 = vmatprep.subr.mxu0 0.0
        %543 = vmatpush1.msra.mxu0 %v510
        %544 = vmatprep.subr.mxu0 0.0
        %545 = vmatpush1.msra.mxu0 %v511
        %546 = vmatprep.subr.mxu0 0.0
        %547 = vmatpush1.msra.mxu0 %v512
        %548 = vmatprep.subr.mxu0 0.0
        %549 = vmatpush1.msra.mxu0 %v513
        %550 = vmatprep.subr.mxu0 0.0
        %551 = vmatpush1.msra.mxu0 %v514
        %552 = vmatprep.subr.mxu0 0.0
        %553 = vmatpush1.msra.mxu0 0.0
        %554 = vmatprep.subr.mxu0 0.0
        %555 = vmatpush1.msra.mxu0 0.0
        %556 = vmatprep.subr.mxu0 0.0
        %557 = vmatpush1.msra.mxu0 0.0
        %558 = vmatprep.subr.mxu0 0.0
        %559 = vmatpush1.msra.mxu0 0.0
        %560 = vmatprep.subr.mxu0 0.0
        %561 = vmatpush1.msra.mxu0 0.0
        %562 = vmatprep.subr.mxu0 0.0
        %563 = vmatpush1.msra.mxu0 0.0
        %564 = vmatprep.subr.mxu0 0.0
        %565 = vmatpush1.msra.mxu0 0.0
        %566 = vmatprep.subr.mxu0 0.0
        %567 = vmatpush1.msra.mxu0 0.0
        %568 = vmatprep.subr.mxu0 0.0
        %569 = vmatpush1.msra.mxu0 0.0
        %570 = vmatprep.subr.mxu0 0.0
        %571 = vmatpush1.msra.mxu0 0.0
        %572 = vmatprep.subr.mxu0 0.0
        %573 = vmatpush1.msra.mxu0 0.0
        %574 = vmatprep.subr.mxu0 0.0
        %575 = vmatpush1.msra.mxu0 0.0
        %576 = vmatprep.subr.mxu0 0.0
        %577 = vmatpush1.msra.mxu0 0.0
        %578 = vmatprep.subr.mxu0 0.0
        %579 = vmatpush1.msra.mxu0 0.0
        %580 = vmatprep.subr.mxu0 0.0
        %581 = vmatpush1.msra.mxu0 0.0
        %582 = vmatprep.subr.mxu0 0.0
        %583 = vmatpush1.msra.mxu0 0.0
        %584 = vmatprep.mubr.f32.mxu0 0.0
        %585 = vmatmul.mubr.f32.gmra.mrb[0].mxu0 %v497
        %v586 = vpop.f32.mrb[0].mxu0
        %v587 = vadd.f32 %v519, %v586
        %v588 = vpop.f32.mrb[0].mxu0
        %589 = vdwg.mxu0
        %590 = vadd.xlane.f32.xlu0 %v587
        %v591 = vpop.xlane.xlu0 %590
        %v592 = vmul.f32 %v591, %v349
        %v593 = vsub.f32 %v587, %v592
        %v594 = vmul.f32 %v593, %v593
        %595 = vadd.xlane.f32.xlu0 %v594
        %v596 = vpop.xlane.xlu0 %595
        %v597 = vmul.f32 %v596, %v349
        %v598 = vadd.f32 %v597, 1e-05
        %v599 = vrsqrt.pop %v598
        %v600 = vmul.f32 %v593, %v599
        %v601 = vld [vmem:[%s3 + $0x2] sm:$0x1]
        %v602 = vlaneseq
        %v603 = vshrl.u32 %v602, 7
        %v604 = vsub.s32 0, %v603
        %v605 = vrot.slane %v601, %v604
        %v606 = vmul.f32 %v600, %v605
        %v607 = vld [vmem:[%s4 + $0x2] sm:$0x1]
        %v608 = vlaneseq
        %v609 = vshrl.u32 %v608, 7
        %v610 = vsub.s32 0, %v609
        %v611 = vrot.slane %v607, %v610
        %v612 = vadd.f32 %v606, %v611
        %v613 = vmul.f32 %v612, 0.5
        %v614 = vmul.f32 %v612, 0.70710677
        %v615 = verf.f32.pop %v614
        %v616 = vadd.f32 %v615, 1.0
        %v617 = vmul.f32 %v613, %v616
        %v618 = vadd.f32 %v497, %v617
        %619 = vst [vmem:[%s254] sm:$0xff] %v618
        %s620 = sand.u32 %s141, 1
        %s621 = scalar_lea.sflag [#allocation4], %s620
        %s622 = sand.u32 %s141, 1
        %s623 = smul.addr %s622, 8
        %s624 = scalar_lea.vmem [#allocation7], %s623
        // Predicated region
        $region49: #{tpu_custom_call.1} parent=39 // pred_check
          %p625 = pneg %p151
        $region50: #{tpu_custom_call.1} parent=39 // pred_check_branch
          %627 = sbr.rel (%p625) target = $region52
        $region51: #{tpu_custom_call.1} parent=39 // pred_region
          %s629 = ssub.s32 128, 128
          %630 = vsyncadd %s621, %s629
          %s631 = smul.addr %s23, 128
          %s632 = scalar_lea.hbm %s5, %s631
          %s634 = sshll.u32 %s624, 4
          %s635 = int_to_ptr.vmem [resolvable:$true] %s634
          %637 = dma.vmem_to_hbm [thread:$0]  %s635, 128, %s632, %s621
        $region52: #{tpu_custom_call.1} parent=39 // pred_fallthru
          _
      $region40: #{tpu_custom_call.1} parent=5 // pred_fallthru
        _
      %p638 = scmp.le.s32.totalorder 2, %s18
      // Predicated region
      $region53: #{tpu_custom_call.1} parent=5 // pred_check
        %p639 = pneg %p638
      $region54: #{tpu_custom_call.1} parent=5 // pred_check_branch
        %641 = sbr.rel (%p639) target = $region56
      $region55: #{tpu_custom_call.1} parent=5 // pred_region
        %s642 = ssub.s32 %s18, 2
        // Predicated region
        $region57: #{tpu_custom_call.1} parent=55 // pred_check
          %p643 = pneg %p157
        $region58: #{tpu_custom_call.1} parent=55 // pred_check_branch
          %645 = sbr.rel (%p643) target = $region60
        $region59: #{tpu_custom_call.1} parent=55 // pred_region
          %s646 = sand.u32 %s142, 1
          %s647 = scalar_lea.sflag [#allocation4], %s646
          %s648 = sand.u32 %s142, 1
          %s649 = smul.addr %s648, 8
          %s650 = scalar_lea.vmem [#allocation7], %s649
          %651 = dma.done %s647, 128
        $region60: #{tpu_custom_call.1} parent=55 // pred_fallthru
          _
      $region56: #{tpu_custom_call.1} parent=5 // pred_fallthru
        _
    $region6: #{tpu_custom_call.1} parent=1 // loop_footer
      %s22 = sadd.s32 1, %s18
    $region7: #{tpu_custom_call.1} parent=1 // loop_footer_branch
      %17 = sbr.rel target = $region3
    $region8: #{tpu_custom_call.1} parent=1 // loop_exit
      _
    %652 = vsyncpa [#allocation3], 1
    %s653 = scalar_lea.sflag [#allocation3], 1
    %654 = vsyncpa %s653, 1
    %655 = vsyncpa [#allocation6], 1
    %656 = vsyncpa [#allocation4], 1
    %s657 = scalar_lea.sflag [#allocation4], 1
    %658 = vsyncpa %s657, 1

</llo_original>
